<compile_context>
chip_gen: v6e
topology: v6e:2x2x1
jax: 0.10.0
libtpu: 0.0.40
codegen_flags: <defaults>
</compile_context>

<pallas_src>
import functools

import jax
import jax.numpy as jnp
from jax.experimental import pallas as pl
from jax.experimental.pallas import tpu as pltpu


def _pick_batch_block(n, max_nb=4):
    """Largest samples-per-step NB (<= max_nb) dividing N while keeping the
    parallel grid axis >= 2 blocks (keeps both v7x TensorCores busy)."""
    if n <= 1:
        return 1
    for nb in range(max_nb, 1, -1):
        if n % nb == 0 and n // nb >= 2:
            return nb
    return 1


# ----------------------------------------------------------------------------
# Fused kernel: conv_stem (3x3, stride 1, SAME, C_in=1) + folded BN + SiLU
#               + AdaptiveAvgPool2d((1,1)) + Flatten + Linear(C, 1)
# One grid step = NB whole samples.
# ----------------------------------------------------------------------------
def fused_stem_head_kernel(x_ref, wb_ref, bfc_ref, out_ref, *, NB, H, W, C):
    """
    x_ref  : (NB, H*W) f32   flattened (row-major) unpadded input images
    wb_ref : (C, 11)   f32   [:, 0:9] BN-folded 3x3 taps (k = kh*3 + kw),
                             [:, 9] folded bias, [:, 10] final fc weight
    bfc_ref: (1, 1)    f32   final fc bias (SMEM scalar)
    out_ref: (1, 128)  f32   lane n (< NB) holds the result of sample n
    """
    HW = H * W
    x = x_ref[...]                                             # (NB, HW) f32
    wb = wb_ref[...]                                           # (C, 11)  f32

    # Flat pixel index along lanes; row starts computed with compares only
    # (no vector integer div/rem).  All hoisted out of the tap loop.
    pix = jax.lax.broadcasted_iota(jnp.int32, (1, HW), 1)
    row = jnp.zeros((1, HW), jnp.int32)
    for r in range(1, H):
        row = row + (pix >= r * W).astype(jnp.int32)
    row_start = row * W                                        # W * (pix // W)

    # 3x3 stride-1 SAME conv as 9 lane-dense VPU FMAs.  The spatial shift is a
    # lane roll of the flat pixel axis (XLU) + a boundary mask; the wrap-around
    # lanes of the roll fall exactly on masked-out SAME-padding positions.
    y = jnp.zeros((NB, C, HW), jnp.float32)
    for k in range(9):
        kh, kw = divmod(k, 3)
        di, dj = kh - 1, kw - 1
        off = di * W + dj                                      # flat pixel offset
        shifted = x if off == 0 else pltpu.roll(x, (-off) % HW, axis=1)

        valid = None
        if di == -1:
            valid = pix >= W                                   # drop row 0
        elif di == 1:
            valid = pix < (H - 1) * W                          # drop row H-1
        if dj == -1:
            m = pix != row_start                               # drop col 0
            valid = m if valid is None else (valid & m)
        elif dj == 1:
            m = pix != row_start + (W - 1)                     # drop col W-1
            valid = m if valid is None else (valid & m)
        tap = shifted if valid is None else jnp.where(valid, shifted, 0.0)

        # (NB, 1, HW) * (1, C, 1) -> (NB, C, HW): pixels lane-dense, C on sublanes.
        y = y + tap[:, None, :] * wb[:, k:k + 1][None, :, :]

    y = y + wb[:, 9:10][None, :, :]                            # folded BN bias

    # SiLU in f32 (v5e-safe; bf16 sigmoid is a v6e/v7x-only EUP optimization).
    s = y * jax.nn.sigmoid(y)                                  # (NB, C, HW)

    # GAP over pixels first (lane reduction); fc contraction on the tiny (C,)
    # vector only — no full-feature-map multiply by w_fc.
    gap = jnp.sum(s, axis=-1, keepdims=True)                   # (NB, C, 1)
    weighted = gap * wb[:, 10:11][None, :, :]                  # (NB, C, 1)

    inv_hw = 1.0 / float(HW)
    b_fc = bfc_ref[0, 0]
    lane = jax.lax.broadcasted_iota(jnp.int32, (1, 128), 1)
    acc = jnp.zeros((1, 128), jnp.float32)
    for n in range(NB):                                        # NB <= 4, unrolled
        res_n = jnp.sum(weighted[n]) * inv_hw + b_fc
        acc = jnp.where(lane == n, res_n, acc)
    out_ref[...] = acc                                         # single lane-dense store


def fused_forward_pallas(x_flat, wb, b_fc, *, NB, H, W):
    G = x_flat.shape[0]
    C = wb.shape[0]
    HW = H * W
    n_samples = G * NB

    kernel = functools.partial(fused_stem_head_kernel, NB=NB, H=H, W=W, C=C)

    cost = pl.CostEstimate(
        flops=n_samples * C * HW * 20,                 # 9 FMAs + SiLU + GAP
        transcendentals=n_samples * C * HW,            # one exp per SiLU elem
        bytes_accessed=x_flat.size * 4 + wb.size * 4 + 4 + G * 128 * 4,
    )

    out = pl.pallas_call(
        kernel,
        out_shape=jax.ShapeDtypeStruct((G, 1, 128), jnp.float32),
        grid_spec=pltpu.PrefetchScalarGridSpec(
            num_scalar_prefetch=0,
            grid=(G,),
            in_specs=[
                pl.BlockSpec((None, NB, HW), lambda g: (g, 0, 0)),
                pl.BlockSpec((C, 11), lambda g: (0, 0)),
                pl.BlockSpec(memory_space=pltpu.MemorySpace.SMEM),   # b_fc scalar
            ],
            out_specs=pl.BlockSpec((None, 1, 128), lambda g: (g, 0, 0)),
        ),
        compiler_params=pltpu.CompilerParams(
            dimension_semantics=("parallel",),
            vmem_limit_bytes=32 * 1024 * 1024,
        ),
        cost_estimate=cost,
    )(x_flat, wb, b_fc)
    return out


# ----------------------------------------------------------------------------
# Wrapper: layout (free reshape only), BN folding, weight packing.
# ----------------------------------------------------------------------------
def simple_stride1_forward(x_nchw, params):
    N, Cin, H, W = x_nchw.shape
    assert Cin == 1, "module is built with in_chans=1"
    HW = H * W

    NB = _pick_batch_block(N)
    G = N // NB

    # Unpadded f32 image, flattened row-major: pure metadata reshape, so the
    # pixels make exactly one HBM -> VMEM trip (no pad / bf16 pre-pass).
    x_flat = x_nchw.astype(jnp.float32).reshape(G, NB, HW)

    # Fold eval-mode BatchNorm into the conv taps; pack taps + bias + fc weight
    # into one (C, 11) operand with C on sublanes (the layout the kernel's
    # (C, pixels) broadcasts need — no per-tap lane-padded tiles).
    w_conv = params["conv_w"]                                  # (C, 1, 3, 3)
    C = w_conv.shape[0]
    scale = params["bn_gamma"] / jnp.sqrt(params["bn_var"] + 1e-5)
    w_taps = w_conv.reshape(C, 9) * scale[:, None]             # (C, 9)
    b_col = (params["bn_beta"] - params["bn_mean"] * scale).reshape(C, 1)
    wfc_col = params["fc_w"].reshape(C, 1)                     # (C, 1)
    wb = jnp.concatenate([w_taps, b_col, wfc_col], axis=1).astype(jnp.float32)

    b_fc = params["fc_b"].reshape(1, 1).astype(jnp.float32)

    out = fused_forward_pallas(x_flat, wb, b_fc, NB=NB, H=H, W=W)
    return out[:, 0, :NB].reshape(N, 1)                        # sample-major order


def init_params(key, num_features=32):
    ks = jax.random.split(key, 6)
    return {
        "conv_w": 0.1 * jax.random.normal(ks[0], (num_features, 1, 3, 3), jnp.float32),
        "bn_gamma": 1.0 + 0.05 * jax.random.normal(ks[1], (num_features,), jnp.float32),
        "bn_beta": 0.05 * jax.random.normal(ks[2], (num_features,), jnp.float32),
        "bn_mean": 0.05 * jax.random.normal(ks[3], (num_features,), jnp.float32),
        "bn_var": jnp.abs(1.0 + 0.05 * jax.random.normal(ks[4], (num_features,), jnp.float32)),
        "fc_w": 0.1 * jax.random.normal(ks[5], (1, num_features), jnp.float32),
        "fc_b": jnp.zeros((1,), jnp.float32),
    }


def reference_forward(x_nchw, params):
    """Plain-JAX reference (all f32, same BN folding)."""
    x = jnp.transpose(x_nchw, (0, 2, 3, 1)).astype(jnp.float32)        # NHWC
    scale = params["bn_gamma"] / jnp.sqrt(params["bn_var"] + 1e-5)
    w = jnp.transpose(params["conv_w"], (2, 3, 1, 0)) * scale          # (3,3,1,C)
    b = params["bn_beta"] - params["bn_mean"] * scale
    y = jax.lax.conv_general_dilated(
        x, w, window_strides=(1, 1), padding="SAME",
        dimension_numbers=("NHWC", "HWIO", "NHWC"),
        precision=jax.lax.Precision.HIGHEST) + b
    y = y * jax.nn.sigmoid(y)
    pooled = jnp.mean(y, axis=(1, 2))                                  # (N, C)
    return jnp.dot(pooled, params["fc_w"].T,
                   precision=jax.lax.Precision.HIGHEST) + params["fc_b"]


if __name__ == "__main__":
    key = jax.random.PRNGKey(0)
    k_x, k_p = jax.random.split(key)

    N, C_in, H, W = 2, 1, 16, 16                   # in_chans = 1 per the module
    num_features = 32
    x = jax.random.normal(k_x, (N, C_in, H, W), jnp.float32)
    params = init_params(k_p, num_features)

    out = jax.block_until_ready(simple_stride1_forward(x, params))
    ref = reference_forward(x, params)

    assert out.shape == (N, 1), out.shape
    assert jnp.allclose(out, ref, atol=2e-4, rtol=2e-4), (out, ref)

    print("KERNEL_OK")
</pallas_src>

<mosaic_0001>
module attributes {stable_mosaic.version = 11 : i64} {
  func.func @fused_stem_head_kernel(%arg0: i32, %arg1: memref<1x1x256xf32, #tpu.memory_space<vmem>>, %arg2: memref<32x11xf32, #tpu.memory_space<vmem>>, %arg3: memref<1x1xf32, #tpu.memory_space<smem>>, %arg4: memref<1x1x128xf32, #tpu.memory_space<vmem>>) attributes {dimension_semantics = [#tpu.dimension_semantics<parallel>], iteration_bounds = array<i64: 2>, scalar_prefetch = 0 : i64, scratch_operands = 0 : i64, tpu.core_type = #tpu.core_type<tc>, window_params = [{transform_indices = @transform_0, window_bounds = array<i64: 1, 1, 256>}, {pipeline_mode = #tpu.pipeline_mode<synchronous>, transform_indices = @transform_1, window_bounds = array<i64: 32, 11>}, {transform_indices = @transform_2, window_bounds = array<i64: 1, 1>}, {transform_indices = @transform_3, window_bounds = array<i64: 1, 1, 128>}]} {
    %c0 = arith.constant 0 : index
    %c0_0 = arith.constant 0 : index
    %c0_1 = arith.constant 0 : index
    %0 = vector.load %arg1[%c0, %c0_0, %c0_1] : memref<1x1x256xf32, #tpu.memory_space<vmem>>, vector<1x1x256xf32>
    %1 = vector.shape_cast %0 : vector<1x1x256xf32> to vector<1x256xf32>
    %c0_2 = arith.constant 0 : index
    %c0_3 = arith.constant 0 : index
    %2 = vector.load %arg2[%c0_2, %c0_3] : memref<32x11xf32, #tpu.memory_space<vmem>>, vector<32x11xf32>
    %3 = tpu.iota {dimensions = array<i32: 1>} : vector<1x256xi32>
    %c0_i32 = arith.constant 0 : i32
    %4 = vector.broadcast %c0_i32 : i32 to vector<1x256xi32>
    %c16_i32 = arith.constant 16 : i32
    %5 = vector.broadcast %c16_i32 : i32 to vector<1x256xi32>
    %6 = arith.cmpi sge, %3, %5 : vector<1x256xi32>
    %7 = arith.extui %6 : vector<1x256xi1> to vector<1x256xi32>
    %8 = arith.addi %4, %7 : vector<1x256xi32>
    %c32_i32 = arith.constant 32 : i32
    %9 = vector.broadcast %c32_i32 : i32 to vector<1x256xi32>
    %10 = arith.cmpi sge, %3, %9 : vector<1x256xi32>
    %11 = arith.extui %10 : vector<1x256xi1> to vector<1x256xi32>
    %12 = arith.addi %8, %11 : vector<1x256xi32>
    %c48_i32 = arith.constant 48 : i32
    %13 = vector.broadcast %c48_i32 : i32 to vector<1x256xi32>
    %14 = arith.cmpi sge, %3, %13 : vector<1x256xi32>
    %15 = arith.extui %14 : vector<1x256xi1> to vector<1x256xi32>
    %16 = arith.addi %12, %15 : vector<1x256xi32>
    %c64_i32 = arith.constant 64 : i32
    %17 = vector.broadcast %c64_i32 : i32 to vector<1x256xi32>
    %18 = arith.cmpi sge, %3, %17 : vector<1x256xi32>
    %19 = arith.extui %18 : vector<1x256xi1> to vector<1x256xi32>
    %20 = arith.addi %16, %19 : vector<1x256xi32>
    %c80_i32 = arith.constant 80 : i32
    %21 = vector.broadcast %c80_i32 : i32 to vector<1x256xi32>
    %22 = arith.cmpi sge, %3, %21 : vector<1x256xi32>
    %23 = arith.extui %22 : vector<1x256xi1> to vector<1x256xi32>
    %24 = arith.addi %20, %23 : vector<1x256xi32>
    %c96_i32 = arith.constant 96 : i32
    %25 = vector.broadcast %c96_i32 : i32 to vector<1x256xi32>
    %26 = arith.cmpi sge, %3, %25 : vector<1x256xi32>
    %27 = arith.extui %26 : vector<1x256xi1> to vector<1x256xi32>
    %28 = arith.addi %24, %27 : vector<1x256xi32>
    %c112_i32 = arith.constant 112 : i32
    %29 = vector.broadcast %c112_i32 : i32 to vector<1x256xi32>
    %30 = arith.cmpi sge, %3, %29 : vector<1x256xi32>
    %31 = arith.extui %30 : vector<1x256xi1> to vector<1x256xi32>
    %32 = arith.addi %28, %31 : vector<1x256xi32>
    %c128_i32 = arith.constant 128 : i32
    %33 = vector.broadcast %c128_i32 : i32 to vector<1x256xi32>
    %34 = arith.cmpi sge, %3, %33 : vector<1x256xi32>
    %35 = arith.extui %34 : vector<1x256xi1> to vector<1x256xi32>
    %36 = arith.addi %32, %35 : vector<1x256xi32>
    %c144_i32 = arith.constant 144 : i32
    %37 = vector.broadcast %c144_i32 : i32 to vector<1x256xi32>
    %38 = arith.cmpi sge, %3, %37 : vector<1x256xi32>
    %39 = arith.extui %38 : vector<1x256xi1> to vector<1x256xi32>
    %40 = arith.addi %36, %39 : vector<1x256xi32>
    %c160_i32 = arith.constant 160 : i32
    %41 = vector.broadcast %c160_i32 : i32 to vector<1x256xi32>
    %42 = arith.cmpi sge, %3, %41 : vector<1x256xi32>
    %43 = arith.extui %42 : vector<1x256xi1> to vector<1x256xi32>
    %44 = arith.addi %40, %43 : vector<1x256xi32>
    %c176_i32 = arith.constant 176 : i32
    %45 = vector.broadcast %c176_i32 : i32 to vector<1x256xi32>
    %46 = arith.cmpi sge, %3, %45 : vector<1x256xi32>
    %47 = arith.extui %46 : vector<1x256xi1> to vector<1x256xi32>
    %48 = arith.addi %44, %47 : vector<1x256xi32>
    %c192_i32 = arith.constant 192 : i32
    %49 = vector.broadcast %c192_i32 : i32 to vector<1x256xi32>
    %50 = arith.cmpi sge, %3, %49 : vector<1x256xi32>
    %51 = arith.extui %50 : vector<1x256xi1> to vector<1x256xi32>
    %52 = arith.addi %48, %51 : vector<1x256xi32>
    %c208_i32 = arith.constant 208 : i32
    %53 = vector.broadcast %c208_i32 : i32 to vector<1x256xi32>
    %54 = arith.cmpi sge, %3, %53 : vector<1x256xi32>
    %55 = arith.extui %54 : vector<1x256xi1> to vector<1x256xi32>
    %56 = arith.addi %52, %55 : vector<1x256xi32>
    %c224_i32 = arith.constant 224 : i32
    %57 = vector.broadcast %c224_i32 : i32 to vector<1x256xi32>
    %58 = arith.cmpi sge, %3, %57 : vector<1x256xi32>
    %59 = arith.extui %58 : vector<1x256xi1> to vector<1x256xi32>
    %60 = arith.addi %56, %59 : vector<1x256xi32>
    %c240_i32 = arith.constant 240 : i32
    %61 = vector.broadcast %c240_i32 : i32 to vector<1x256xi32>
    %62 = arith.cmpi sge, %3, %61 : vector<1x256xi32>
    %63 = arith.extui %62 : vector<1x256xi1> to vector<1x256xi32>
    %64 = arith.addi %60, %63 : vector<1x256xi32>
    %c16_i32_4 = arith.constant 16 : i32
    %65 = vector.broadcast %c16_i32_4 : i32 to vector<1x256xi32>
    %66 = arith.muli %64, %65 : vector<1x256xi32>
    %cst = arith.constant 0.000000e+00 : f32
    %67 = vector.broadcast %cst : f32 to vector<1x32x256xf32>
    %c17_i32 = arith.constant 17 : i32
    %68 = tpu.dynamic_rotate %1 by %c17_i32 dim 1 : vector<1x256xf32>, i32 -> vector<1x256xf32>
    %c16_i32_5 = arith.constant 16 : i32
    %69 = vector.broadcast %c16_i32_5 : i32 to vector<1x256xi32>
    %70 = arith.cmpi sge, %3, %69 : vector<1x256xi32>
    %71 = arith.cmpi ne, %3, %66 : vector<1x256xi32>
    %72 = arith.andi %70, %71 : vector<1x256xi1>
    %cst_6 = arith.constant 0.000000e+00 : f32
    %73 = vector.broadcast %cst_6 : f32 to vector<1x256xf32>
    %74 = arith.select %72, %68, %73 : vector<1x256xi1>, vector<1x256xf32>
    %75 = vector.shape_cast %74 : vector<1x256xf32> to vector<1x1x256xf32>
    %76 = vector.extract_strided_slice %2 {offsets = [0, 0], sizes = [32, 1], strides = [1, 1]} : vector<32x11xf32> to vector<32x1xf32>
    %77 = vector.shape_cast %76 : vector<32x1xf32> to vector<1x32x1xf32>
    %78 = vector.broadcast %75 : vector<1x1x256xf32> to vector<1x32x256xf32>
    %79 = vector.broadcast %77 : vector<1x32x1xf32> to vector<1x32x256xf32>
    %80 = arith.mulf %78, %79 : vector<1x32x256xf32>
    %81 = arith.addf %67, %80 : vector<1x32x256xf32>
    %c16_i32_7 = arith.constant 16 : i32
    %82 = tpu.dynamic_rotate %1 by %c16_i32_7 dim 1 : vector<1x256xf32>, i32 -> vector<1x256xf32>
    %c16_i32_8 = arith.constant 16 : i32
    %83 = vector.broadcast %c16_i32_8 : i32 to vector<1x256xi32>
    %84 = arith.cmpi sge, %3, %83 : vector<1x256xi32>
    %cst_9 = arith.constant 0.000000e+00 : f32
    %85 = vector.broadcast %cst_9 : f32 to vector<1x256xf32>
    %86 = arith.select %84, %82, %85 : vector<1x256xi1>, vector<1x256xf32>
    %87 = vector.shape_cast %86 : vector<1x256xf32> to vector<1x1x256xf32>
    %88 = vector.extract_strided_slice %2 {offsets = [0, 1], sizes = [32, 1], strides = [1, 1]} : vector<32x11xf32> to vector<32x1xf32>
    %89 = vector.shape_cast %88 : vector<32x1xf32> to vector<1x32x1xf32>
    %90 = vector.broadcast %87 : vector<1x1x256xf32> to vector<1x32x256xf32>
    %91 = vector.broadcast %89 : vector<1x32x1xf32> to vector<1x32x256xf32>
    %92 = arith.mulf %90, %91 : vector<1x32x256xf32>
    %93 = arith.addf %81, %92 : vector<1x32x256xf32>
    %c15_i32 = arith.constant 15 : i32
    %94 = tpu.dynamic_rotate %1 by %c15_i32 dim 1 : vector<1x256xf32>, i32 -> vector<1x256xf32>
    %c16_i32_10 = arith.constant 16 : i32
    %95 = vector.broadcast %c16_i32_10 : i32 to vector<1x256xi32>
    %96 = arith.cmpi sge, %3, %95 : vector<1x256xi32>
    %c15_i32_11 = arith.constant 15 : i32
    %97 = vector.broadcast %c15_i32_11 : i32 to vector<1x256xi32>
    %98 = arith.addi %66, %97 : vector<1x256xi32>
    %99 = arith.cmpi ne, %3, %98 : vector<1x256xi32>
    %100 = arith.andi %96, %99 : vector<1x256xi1>
    %cst_12 = arith.constant 0.000000e+00 : f32
    %101 = vector.broadcast %cst_12 : f32 to vector<1x256xf32>
    %102 = arith.select %100, %94, %101 : vector<1x256xi1>, vector<1x256xf32>
    %103 = vector.shape_cast %102 : vector<1x256xf32> to vector<1x1x256xf32>
    %104 = vector.extract_strided_slice %2 {offsets = [0, 2], sizes = [32, 1], strides = [1, 1]} : vector<32x11xf32> to vector<32x1xf32>
    %105 = vector.shape_cast %104 : vector<32x1xf32> to vector<1x32x1xf32>
    %106 = vector.broadcast %103 : vector<1x1x256xf32> to vector<1x32x256xf32>
    %107 = vector.broadcast %105 : vector<1x32x1xf32> to vector<1x32x256xf32>
    %108 = arith.mulf %106, %107 : vector<1x32x256xf32>
    %109 = arith.addf %93, %108 : vector<1x32x256xf32>
    %c1_i32 = arith.constant 1 : i32
    %110 = tpu.dynamic_rotate %1 by %c1_i32 dim 1 : vector<1x256xf32>, i32 -> vector<1x256xf32>
    %111 = arith.cmpi ne, %3, %66 : vector<1x256xi32>
    %cst_13 = arith.constant 0.000000e+00 : f32
    %112 = vector.broadcast %cst_13 : f32 to vector<1x256xf32>
    %113 = arith.select %111, %110, %112 : vector<1x256xi1>, vector<1x256xf32>
    %114 = vector.shape_cast %113 : vector<1x256xf32> to vector<1x1x256xf32>
    %115 = vector.extract_strided_slice %2 {offsets = [0, 3], sizes = [32, 1], strides = [1, 1]} : vector<32x11xf32> to vector<32x1xf32>
    %116 = vector.shape_cast %115 : vector<32x1xf32> to vector<1x32x1xf32>
    %117 = vector.broadcast %114 : vector<1x1x256xf32> to vector<1x32x256xf32>
    %118 = vector.broadcast %116 : vector<1x32x1xf32> to vector<1x32x256xf32>
    %119 = arith.mulf %117, %118 : vector<1x32x256xf32>
    %120 = arith.addf %109, %119 : vector<1x32x256xf32>
    %121 = vector.shape_cast %1 : vector<1x256xf32> to vector<1x1x256xf32>
    %122 = vector.extract_strided_slice %2 {offsets = [0, 4], sizes = [32, 1], strides = [1, 1]} : vector<32x11xf32> to vector<32x1xf32>
    %123 = vector.shape_cast %122 : vector<32x1xf32> to vector<1x32x1xf32>
    %124 = vector.broadcast %121 : vector<1x1x256xf32> to vector<1x32x256xf32>
    %125 = vector.broadcast %123 : vector<1x32x1xf32> to vector<1x32x256xf32>
    %126 = arith.mulf %124, %125 : vector<1x32x256xf32>
    %127 = arith.addf %120, %126 : vector<1x32x256xf32>
    %c255_i32 = arith.constant 255 : i32
    %128 = tpu.dynamic_rotate %1 by %c255_i32 dim 1 : vector<1x256xf32>, i32 -> vector<1x256xf32>
    %c15_i32_14 = arith.constant 15 : i32
    %129 = vector.broadcast %c15_i32_14 : i32 to vector<1x256xi32>
    %130 = arith.addi %66, %129 : vector<1x256xi32>
    %131 = arith.cmpi ne, %3, %130 : vector<1x256xi32>
    %cst_15 = arith.constant 0.000000e+00 : f32
    %132 = vector.broadcast %cst_15 : f32 to vector<1x256xf32>
    %133 = arith.select %131, %128, %132 : vector<1x256xi1>, vector<1x256xf32>
    %134 = vector.shape_cast %133 : vector<1x256xf32> to vector<1x1x256xf32>
    %135 = vector.extract_strided_slice %2 {offsets = [0, 5], sizes = [32, 1], strides = [1, 1]} : vector<32x11xf32> to vector<32x1xf32>
    %136 = vector.shape_cast %135 : vector<32x1xf32> to vector<1x32x1xf32>
    %137 = vector.broadcast %134 : vector<1x1x256xf32> to vector<1x32x256xf32>
    %138 = vector.broadcast %136 : vector<1x32x1xf32> to vector<1x32x256xf32>
    %139 = arith.mulf %137, %138 : vector<1x32x256xf32>
    %140 = arith.addf %127, %139 : vector<1x32x256xf32>
    %c241_i32 = arith.constant 241 : i32
    %141 = tpu.dynamic_rotate %1 by %c241_i32 dim 1 : vector<1x256xf32>, i32 -> vector<1x256xf32>
    %c240_i32_16 = arith.constant 240 : i32
    %142 = vector.broadcast %c240_i32_16 : i32 to vector<1x256xi32>
    %143 = arith.cmpi slt, %3, %142 : vector<1x256xi32>
    %144 = arith.cmpi ne, %3, %66 : vector<1x256xi32>
    %145 = arith.andi %143, %144 : vector<1x256xi1>
    %cst_17 = arith.constant 0.000000e+00 : f32
    %146 = vector.broadcast %cst_17 : f32 to vector<1x256xf32>
    %147 = arith.select %145, %141, %146 : vector<1x256xi1>, vector<1x256xf32>
    %148 = vector.shape_cast %147 : vector<1x256xf32> to vector<1x1x256xf32>
    %149 = vector.extract_strided_slice %2 {offsets = [0, 6], sizes = [32, 1], strides = [1, 1]} : vector<32x11xf32> to vector<32x1xf32>
    %150 = vector.shape_cast %149 : vector<32x1xf32> to vector<1x32x1xf32>
    %151 = vector.broadcast %148 : vector<1x1x256xf32> to vector<1x32x256xf32>
    %152 = vector.broadcast %150 : vector<1x32x1xf32> to vector<1x32x256xf32>
    %153 = arith.mulf %151, %152 : vector<1x32x256xf32>
    %154 = arith.addf %140, %153 : vector<1x32x256xf32>
    %c240_i32_18 = arith.constant 240 : i32
    %155 = tpu.dynamic_rotate %1 by %c240_i32_18 dim 1 : vector<1x256xf32>, i32 -> vector<1x256xf32>
    %c240_i32_19 = arith.constant 240 : i32
    %156 = vector.broadcast %c240_i32_19 : i32 to vector<1x256xi32>
    %157 = arith.cmpi slt, %3, %156 : vector<1x256xi32>
    %cst_20 = arith.constant 0.000000e+00 : f32
    %158 = vector.broadcast %cst_20 : f32 to vector<1x256xf32>
    %159 = arith.select %157, %155, %158 : vector<1x256xi1>, vector<1x256xf32>
    %160 = vector.shape_cast %159 : vector<1x256xf32> to vector<1x1x256xf32>
    %161 = vector.extract_strided_slice %2 {offsets = [0, 7], sizes = [32, 1], strides = [1, 1]} : vector<32x11xf32> to vector<32x1xf32>
    %162 = vector.shape_cast %161 : vector<32x1xf32> to vector<1x32x1xf32>
    %163 = vector.broadcast %160 : vector<1x1x256xf32> to vector<1x32x256xf32>
    %164 = vector.broadcast %162 : vector<1x32x1xf32> to vector<1x32x256xf32>
    %165 = arith.mulf %163, %164 : vector<1x32x256xf32>
    %166 = arith.addf %154, %165 : vector<1x32x256xf32>
    %c239_i32 = arith.constant 239 : i32
    %167 = tpu.dynamic_rotate %1 by %c239_i32 dim 1 : vector<1x256xf32>, i32 -> vector<1x256xf32>
    %c240_i32_21 = arith.constant 240 : i32
    %168 = vector.broadcast %c240_i32_21 : i32 to vector<1x256xi32>
    %169 = arith.cmpi slt, %3, %168 : vector<1x256xi32>
    %c15_i32_22 = arith.constant 15 : i32
    %170 = vector.broadcast %c15_i32_22 : i32 to vector<1x256xi32>
    %171 = arith.addi %66, %170 : vector<1x256xi32>
    %172 = arith.cmpi ne, %3, %171 : vector<1x256xi32>
    %173 = arith.andi %169, %172 : vector<1x256xi1>
    %cst_23 = arith.constant 0.000000e+00 : f32
    %174 = vector.broadcast %cst_23 : f32 to vector<1x256xf32>
    %175 = arith.select %173, %167, %174 : vector<1x256xi1>, vector<1x256xf32>
    %176 = vector.shape_cast %175 : vector<1x256xf32> to vector<1x1x256xf32>
    %177 = vector.extract_strided_slice %2 {offsets = [0, 8], sizes = [32, 1], strides = [1, 1]} : vector<32x11xf32> to vector<32x1xf32>
    %178 = vector.shape_cast %177 : vector<32x1xf32> to vector<1x32x1xf32>
    %179 = vector.broadcast %176 : vector<1x1x256xf32> to vector<1x32x256xf32>
    %180 = vector.broadcast %178 : vector<1x32x1xf32> to vector<1x32x256xf32>
    %181 = arith.mulf %179, %180 : vector<1x32x256xf32>
    %182 = arith.addf %166, %181 : vector<1x32x256xf32>
    %183 = vector.extract_strided_slice %2 {offsets = [0, 9], sizes = [32, 1], strides = [1, 1]} : vector<32x11xf32> to vector<32x1xf32>
    %184 = vector.shape_cast %183 : vector<32x1xf32> to vector<1x32x1xf32>
    %185 = vector.broadcast %184 : vector<1x32x1xf32> to vector<1x32x256xf32>
    %186 = arith.addf %182, %185 : vector<1x32x256xf32>
    %187 = arith.negf %186 : vector<1x32x256xf32>
    %188 = math.exp %187 : vector<1x32x256xf32>
    %cst_24 = arith.constant 1.000000e+00 : f32
    %189 = vector.broadcast %cst_24 : f32 to vector<1x32x256xf32>
    %190 = arith.addf %189, %188 : vector<1x32x256xf32>
    %191 = arith.divf %189, %190 : vector<1x32x256xf32>
    %192 = arith.mulf %186, %191 : vector<1x32x256xf32>
    %cst_25 = arith.constant dense<0.000000e+00> : vector<1x32xf32>
    %193 = vector.multi_reduction <add>, %192, %cst_25 [2] : vector<1x32x256xf32> to vector<1x32xf32>
    %194 = vector.shape_cast %193 : vector<1x32xf32> to vector<1x32x1xf32>
    %195 = vector.extract_strided_slice %2 {offsets = [0, 10], sizes = [32, 1], strides = [1, 1]} : vector<32x11xf32> to vector<32x1xf32>
    %196 = vector.shape_cast %195 : vector<32x1xf32> to vector<1x32x1xf32>
    %197 = arith.mulf %194, %196 : vector<1x32x1xf32>
    %c0_26 = arith.constant 0 : index
    %c0_27 = arith.constant 0 : index
    %198 = memref.load %arg3[%c0_26, %c0_27] : memref<1x1xf32, #tpu.memory_space<smem>>
    %199 = tpu.iota {dimensions = array<i32: 1>} : vector<1x128xi32>
    %cst_28 = arith.constant 0.000000e+00 : f32
    %200 = vector.broadcast %cst_28 : f32 to vector<1x128xf32>
    %201 = vector.shape_cast %197 : vector<1x32x1xf32> to vector<32x1xf32>
    %202 = vector.shape_cast %201 : vector<32x1xf32> to vector<1x32x1xf32>
    %cst_29 = arith.constant dense<0.000000e+00> : vector<1xf32>
    %203 = vector.multi_reduction <add>, %202, %cst_29 [1, 2] : vector<1x32x1xf32> to vector<1xf32>
    %204 = vector.shape_cast %203 : vector<1xf32> to vector<1x1x1xf32>
    %205 = vector.extract %204[0, 0, 0] : f32 from vector<1x1x1xf32>
    %cst_30 = arith.constant 3.906250e-03 : f32
    %206 = arith.mulf %205, %cst_30 : f32
    %207 = arith.addf %206, %198 : f32
    %c0_i32_31 = arith.constant 0 : i32
    %208 = vector.broadcast %c0_i32_31 : i32 to vector<1x128xi32>
    %209 = arith.cmpi eq, %199, %208 : vector<1x128xi32>
    %210 = vector.broadcast %207 : f32 to vector<1x128xf32>
    %211 = arith.select %209, %210, %200 : vector<1x128xi1>, vector<1x128xf32>
    %c0_32 = arith.constant 0 : index
    %c0_33 = arith.constant 0 : index
    %c0_34 = arith.constant 0 : index
    %212 = vector.load %arg4[%c0_32, %c0_33, %c0_34] : memref<1x1x128xf32, #tpu.memory_space<vmem>>, vector<1x1x128xf32>
    %213 = vector.shape_cast %212 : vector<1x1x128xf32> to vector<1x128xf32>
    %214 = vector.shape_cast %211 : vector<1x128xf32> to vector<1x1x128xf32>
    tpu.vector_store %arg4[%c0_32, %c0_33, %c0_34], %214 {strides = array<i32>} : memref<1x1x128xf32, #tpu.memory_space<vmem>>, vector<1x1x128xf32>,
    return
  }
  func.func @transform_0(%arg0: i32) -> (i32, i32, i32) {
    %c0_i32 = arith.constant 0 : i32
    %c0_i32_0 = arith.constant 0 : i32
    %c0_i32_1 = arith.constant 0 : i32
    return %arg0, %c0_i32, %c0_i32_0 : i32, i32, i32
  }
  func.func @transform_1(%arg0: i32) -> (i32, i32) {
    %c0_i32 = arith.constant 0 : i32
    %c0_i32_0 = arith.constant 0 : i32
    %c0_i32_1 = arith.constant 0 : i32
    return %c0_i32, %c0_i32_0 : i32, i32
  }
  func.func @transform_2(%arg0: i32) -> (i32, i32) {
    %c0_i32 = arith.constant 0 : i32
    %c0_i32_0 = arith.constant 0 : i32
    %c0_i32_1 = arith.constant 0 : i32
    return %c0_i32, %c0_i32_0 : i32, i32
  }
  func.func @transform_3(%arg0: i32) -> (i32, i32, i32) {
    %c0_i32 = arith.constant 0 : i32
    %c0_i32_0 = arith.constant 0 : i32
    %c0_i32_1 = arith.constant 0 : i32
    return %arg0, %c0_i32, %c0_i32_0 : i32, i32, i32
  }
}

</mosaic_0001>

<llo_original>
// kernel: tpu_custom_call.1
$region0: #{tpu_custom_call.1}
  #allocation0 [shape = 'u32[]', space=smem, size = 0x4, offset = 0x4, fixed_abs, tag = 'smem constant byte address 0x4 - core index']
  #allocation1 [shape = 'u32[144,128]{1,0:T(1,128)}', space=vmem, size = 0x12000, scoped, tag = 'internal scratch']
  #allocation2 [shape = 'f32[1,1]{1,0:T(1,128)S(6)}', space=smem, size = 0x200, scoped, tag = 'scoped memory for tpu_custom_call.1']
  %s0 = inlined_call_operand.vmem [shape: f32[2,1,256], index: 0, kind: input, shape index: {}]
  %s1 = inlined_call_operand.vmem [shape: f32[32,11], index: 1, kind: input, shape index: {}]
  %s2 = inlined_call_operand.<no memory space> [shape: f32[1,1], index: 2, kind: input, shape index: {}]
  %s3 = inlined_call_operand.hbm [shape: f32[2,1,128], index: 3, kind: output, shape index: {}]
  %s4 = sld [smem:[#allocation0]]
  $region45: #{tpu_custom_call.1} parent=0
    _
  %s6 = ssub.s32 1, %s4
  %s7 = scalar_select 0, %s6, %s4
  %8 = sst [smem:[#allocation2]] %s2
  $region1: #{tpu_custom_call.1} parent=0
    #allocation3 [shape = 'u8[1024]{0}', space=vmem, size = 0x400, scoped, tag = 'output window, operand 0']
    #allocation4 [shape = 's32[2]{0}', space=sflag, size = 0x8, scoped, tag = 'scoped memory for tpu_custom_call.1']
    %9 = vsyncpa [#allocation4], 0
    %s10 = scalar_lea.sflag [#allocation4], 1
    %11 = vsyncpa %s10, 0
    loop: start=0, step=1, limit=4
    $region2: #{tpu_custom_call.1} parent=1 // loop_pre_header
      _
    $region3: #{tpu_custom_call.1} parent=1 // loop_header
      %s13 = sphi 0, %s17
      %p14 = scmp.ge.s32.totalorder %s13, 4
      %s23 = sphi 0, %s25
      %s26 = sphi 0, %s23
      %s27 = sphi 0, %s26
      %s43 = sphi 0, %s27
      %s47 = sphi 0, %s47
      %s49 = sphi 0, %s47
      %s50 = sphi 0, %s49
      %s64 = sphi 0, %s50
      %s68 = sphi 0, %s68
      %s70 = sphi 0, %s68
      %s71 = sphi 0, %s70
      %s85 = sphi 0, %s71
      %s91 = sphi 0, %s93
      %s94 = sphi 0, %s91
      %s95 = sphi 0, %s94
      %s111 = sphi 0, %s95
    $region4: #{tpu_custom_call.1} parent=1 // loop_header_branch
      %16 = sbr.rel (%p14) target = $region8
    $region5: #{tpu_custom_call.1} parent=1 // loop_body
      %s18 = ssub.s32 %s13, 1
      %s19 = ssub.s32 %s13, 2
      %s20 = sadd.s32 %s13, 1
      %s21 = ssub.s32 %s13, %s20
      %p22 = scmp.eq.s32.totalorder %s21, 0
      %s24 = sadd.s32 %s23, 1
      %s25 = scalar_select %p22, %s23, %s24
      %p28 = pneg %p22
      %p29 = scmp.eq.s32.totalorder %s13, 1
      %p30 = por %p28, %p29
      %p31 = scmp.ne.s32.totalorder %s23, %s26
      %p32 = scmp.eq.s32.totalorder %s13, 0
      %p33 = por %p31, %p32
      %p34 = scmp.ne.s32.totalorder %s23, %s26
      %p35 = scmp.eq.s32.totalorder %s18, 1
      %p36 = por %p34, %p35
      %p37 = scmp.ne.s32.totalorder %s26, %s27
      %p38 = scmp.eq.s32.totalorder %s18, 0
      %p39 = por %p37, %p38
      %p40 = scmp.ne.s32.totalorder %s26, %s27
      %p41 = scmp.eq.s32.totalorder %s19, 1
      %p42 = por %p40, %p41
      %p44 = scmp.ne.s32.totalorder %s27, %s43
      %p45 = scmp.eq.s32.totalorder %s19, 0
      %p46 = por %p44, %p45
      %s48 = sadd.s32 %s47, 1
      %p51 = scmp.eq.s32.totalorder %s13, 1
      %p52 = scmp.ne.s32.totalorder %s47, %s49
      %p53 = scmp.eq.s32.totalorder %s13, 0
      %p54 = por %p52, %p53
      %p55 = scmp.ne.s32.totalorder %s47, %s49
      %p56 = scmp.eq.s32.totalorder %s18, 1
      %p57 = por %p55, %p56
      %p58 = scmp.ne.s32.totalorder %s49, %s50
      %p59 = scmp.eq.s32.totalorder %s18, 0
      %p60 = por %p58, %p59
      %p61 = scmp.ne.s32.totalorder %s49, %s50
      %p62 = scmp.eq.s32.totalorder %s19, 1
      %p63 = por %p61, %p62
      %p65 = scmp.ne.s32.totalorder %s50, %s64
      %p66 = scmp.eq.s32.totalorder %s19, 0
      %p67 = por %p65, %p66
      %s69 = sadd.s32 %s68, 1
      %p72 = scmp.eq.s32.totalorder %s13, 1
      %p73 = scmp.ne.s32.totalorder %s68, %s70
      %p74 = scmp.eq.s32.totalorder %s13, 0
      %p75 = por %p73, %p74
      %p76 = scmp.ne.s32.totalorder %s68, %s70
      %p77 = scmp.eq.s32.totalorder %s18, 1
      %p78 = por %p76, %p77
      %p79 = scmp.ne.s32.totalorder %s70, %s71
      %p80 = scmp.eq.s32.totalorder %s18, 0
      %p81 = por %p79, %p80
      %p82 = scmp.ne.s32.totalorder %s70, %s71
      %p83 = scmp.eq.s32.totalorder %s19, 1
      %p84 = por %p82, %p83
      %p86 = scmp.ne.s32.totalorder %s71, %s85
      %p87 = scmp.eq.s32.totalorder %s19, 0
      %p88 = por %p86, %p87
      %s89 = ssub.s32 %s13, %s20
      %p90 = scmp.eq.s32.totalorder %s89, 0
      %s92 = sadd.s32 %s91, 1
      %s93 = scalar_select %p90, %s91, %s92
      %p96 = pneg %p90
      %p97 = scmp.eq.s32.totalorder %s13, 1
      %p98 = por %p96, %p97
      %p99 = scmp.ne.s32.totalorder %s91, %s94
      %p100 = scmp.eq.s32.totalorder %s13, 0
      %p101 = por %p99, %p100
      %p102 = scmp.ne.s32.totalorder %s91, %s94
      %p103 = scmp.eq.s32.totalorder %s18, 1
      %p104 = por %p102, %p103
      %p105 = scmp.ne.s32.totalorder %s94, %s95
      %p106 = scmp.eq.s32.totalorder %s18, 0
      %p107 = por %p105, %p106
      %p108 = scmp.ne.s32.totalorder %s94, %s95
      %p109 = scmp.eq.s32.totalorder %s19, 1
      %p110 = por %p108, %p109
      %p112 = scmp.ne.s32.totalorder %s95, %s111
      %p113 = scmp.eq.s32.totalorder %s19, 0
      %p114 = por %p112, %p113
      %p115 = scmp.le.s32.totalorder 1, %s13
      %p116 = scmp.lt.s32.totalorder %s13, 3
      %p117 = pnand %p115, %p116
      %p118 = pneg %p117
      // Predicated region
      $region9: #{tpu_custom_call.1} parent=5 // pred_check
        _
      $region10: #{tpu_custom_call.1} parent=5 // pred_check_branch
        %120 = sbr.rel (%p117) target = $region12
      $region11: #{tpu_custom_call.1} parent=5 // pred_region
        %s121 = ssub.s32 %s13, 1
        // Predicated region
        $region13: #{tpu_custom_call.1} parent=11 // pred_check
          %p122 = pneg %p60
        $region14: #{tpu_custom_call.1} parent=11 // pred_check_branch
          %124 = sbr.rel (%p122) target = $region16
        $region15: #{tpu_custom_call.1} parent=11 // pred_region
          _
        $region16: #{tpu_custom_call.1} parent=11 // pred_fallthru
          _
        // Predicated region
        $region17: #{tpu_custom_call.1} parent=11 // pred_check
          %p125 = pneg %p81
        $region18: #{tpu_custom_call.1} parent=11 // pred_check_branch
          %127 = sbr.rel (%p125) target = $region20
        $region19: #{tpu_custom_call.1} parent=11 // pred_region
          _
        $region20: #{tpu_custom_call.1} parent=11 // pred_fallthru
          _
      $region12: #{tpu_custom_call.1} parent=5 // pred_fallthru
        _
      %p128 = scmp.lt.s32.totalorder %s13, 2
      // Predicated region
      $region21: #{tpu_custom_call.1} parent=5 // pred_check
        %p129 = pneg %p128
      $region22: #{tpu_custom_call.1} parent=5 // pred_check_branch
        %131 = sbr.rel (%p129) target = $region24
      $region23: #{tpu_custom_call.1} parent=5 // pred_region
        // Predicated region
        $region25: #{tpu_custom_call.1} parent=23 // pred_check
          %p132 = pneg %p33
        $region26: #{tpu_custom_call.1} parent=23 // pred_check_branch
          %134 = sbr.rel (%p132) target = $region28
        $region27: #{tpu_custom_call.1} parent=23 // pred_region
          %p135 = scmp.lt.s32.totalorder %s13, 1
          %s136 = scalar_select %p135, %s13, 1
          %s137 = smul.addr %s136, 2
          %s138 = scalar_lea.vmem %s0, %s137
        $region28: #{tpu_custom_call.1} parent=23 // pred_fallthru
          _
      $region24: #{tpu_custom_call.1} parent=5 // pred_fallthru
        _
      %p139 = scmp.le.s32.totalorder 1, %s13
      %p140 = scmp.lt.s32.totalorder %s13, 3
      %p141 = pnand %p139, %p140
      %p142 = pneg %p141
      // Predicated region
      $region29: #{tpu_custom_call.1} parent=5 // pred_check
        _
      $region30: #{tpu_custom_call.1} parent=5 // pred_check_branch
        %144 = sbr.rel (%p141) target = $region32
      $region31: #{tpu_custom_call.1} parent=5 // pred_region
        %s145 = ssub.s32 %s13, 1
        %p146 = scmp.lt.s32.totalorder %s18, 1
        %s147 = scalar_select %p146, %s18, 1
        %s148 = smul.addr %s147, 2
        %s149 = scalar_lea.vmem %s0, %s148
        %p150 = pneg %p39
        %p151 = pneg %p36
        %p152 = pneg %p60
        %p153 = pneg %p57
        %p154 = pneg %p81
        %p155 = pneg %p78
        %p156 = pneg %p107
        %p157 = pneg %p104
        %s158 = sand.u32 %s94, 1
        %s159 = scalar_lea.sflag [#allocation4], %s158
        %s160 = sand.u32 %s94, 1
        %s161 = scalar_lea.vmem [#allocation3], %s160
        %p162 = scmp.lt.s32.totalorder %s18, 1
        %s163 = scalar_select %p162, %s18, 1
        %s164 = smul.addr %s163, 2
        %s165 = scalar_lea.vmem %s0, %s164
        %v166 = vld [vmem:[%s165] sm:$0x3]
        %v167 = vld [vmem:[%s1] sm:$0xff]
        %v168 = vld [vmem:[%s1 + $0x8] sm:$0xff]
        %v169 = vld [vmem:[%s1 + $0x10] sm:$0xff]
        %v170 = vld [vmem:[%s1 + $0x18] sm:$0xff]
        %v171 = vlaneseq
        %v172 = vand.u32 %v171, 127
        %v173 = vadd.s32 %v172, 128
        %vm174 = vcmp.ge.s32.totalorder %v172, 16
        %vm175 = vcmp.ge.s32.totalorder %v173, 16
        %v176 = vsel %vm174, 1, 0
        %v177 = vsel %vm175, 1, 0
        %vm178 = vcmp.ge.s32.totalorder %v172, 32
        %vm179 = vcmp.ge.s32.totalorder %v173, 32
        %v180 = vsel %vm178, 1, 0
        %v181 = vsel %vm179, 1, 0
        %v182 = vadd.s32 %v176, %v180
        %v183 = vadd.s32 %v177, %v181
        %vm184 = vcmp.ge.s32.totalorder %v172, 48
        %vm185 = vcmp.ge.s32.totalorder %v173, 48
        %v186 = vsel %vm184, 1, 0
        %v187 = vsel %vm185, 1, 0
        %v188 = vadd.s32 %v182, %v186
        %v189 = vadd.s32 %v183, %v187
        %vm190 = vcmp.ge.s32.totalorder %v172, 64
        %vm191 = vcmp.ge.s32.totalorder %v173, 64
        %v192 = vsel %vm190, 1, 0
        %v193 = vsel %vm191, 1, 0
        %v194 = vadd.s32 %v188, %v192
        %v195 = vadd.s32 %v189, %v193
        %vm196 = vcmp.ge.s32.totalorder %v172, 80
        %vm197 = vcmp.ge.s32.totalorder %v173, 80
        %v198 = vsel %vm196, 1, 0
        %v199 = vsel %vm197, 1, 0
        %v200 = vadd.s32 %v194, %v198
        %v201 = vadd.s32 %v195, %v199
        %vm202 = vcmp.ge.s32.totalorder %v172, 96
        %vm203 = vcmp.ge.s32.totalorder %v173, 96
        %v204 = vsel %vm202, 1, 0
        %v205 = vsel %vm203, 1, 0
        %v206 = vadd.s32 %v200, %v204
        %v207 = vadd.s32 %v201, %v205
        %vm208 = vcmp.ge.s32.totalorder %v172, 112
        %vm209 = vcmp.ge.s32.totalorder %v173, 112
        %v210 = vsel %vm208, 1, 0
        %v211 = vsel %vm209, 1, 0
        %v212 = vadd.s32 %v206, %v210
        %v213 = vadd.s32 %v207, %v211
        %vm214 = vcmp.ge.s32.totalorder %v172, 128
        %vm215 = vcmp.ge.s32.totalorder %v173, 128
        %v216 = vsel %vm214, 1, 0
        %v217 = vsel %vm215, 1, 0
        %v218 = vadd.s32 %v212, %v216
        %v219 = vadd.s32 %v213, %v217
        %vm220 = vcmp.ge.s32.totalorder %v172, 144
        %vm221 = vcmp.ge.s32.totalorder %v173, 144
        %v222 = vsel %vm220, 1, 0
        %v223 = vsel %vm221, 1, 0
        %v224 = vadd.s32 %v218, %v222
        %v225 = vadd.s32 %v219, %v223
        %vm226 = vcmp.ge.s32.totalorder %v172, 160
        %vm227 = vcmp.ge.s32.totalorder %v173, 160
        %v228 = vsel %vm226, 1, 0
        %v229 = vsel %vm227, 1, 0
        %v230 = vadd.s32 %v224, %v228
        %v231 = vadd.s32 %v225, %v229
        %vm232 = vcmp.ge.s32.totalorder %v172, 176
        %vm233 = vcmp.ge.s32.totalorder %v173, 176
        %v234 = vsel %vm232, 1, 0
        %v235 = vsel %vm233, 1, 0
        %v236 = vadd.s32 %v230, %v234
        %v237 = vadd.s32 %v231, %v235
        %vm238 = vcmp.ge.s32.totalorder %v172, 192
        %vm239 = vcmp.ge.s32.totalorder %v173, 192
        %v240 = vsel %vm238, 1, 0
        %v241 = vsel %vm239, 1, 0
        %v242 = vadd.s32 %v236, %v240
        %v243 = vadd.s32 %v237, %v241
        %vm244 = vcmp.ge.s32.totalorder %v172, 208
        %vm245 = vcmp.ge.s32.totalorder %v173, 208
        %v246 = vsel %vm244, 1, 0
        %v247 = vsel %vm245, 1, 0
        %v248 = vadd.s32 %v242, %v246
        %v249 = vadd.s32 %v243, %v247
        %vm250 = vcmp.ge.s32.totalorder %v172, 224
        %vm251 = vcmp.ge.s32.totalorder %v173, 224
        %v252 = vsel %vm250, 1, 0
        %v253 = vsel %vm251, 1, 0
        %v254 = vadd.s32 %v248, %v252
        %v255 = vadd.s32 %v249, %v253
        %vm256 = vcmp.ge.s32.totalorder %v172, 240
        %vm257 = vcmp.ge.s32.totalorder %v173, 240
        %v258 = vsel %vm256, 1, 0
        %v259 = vsel %vm257, 1, 0
        %v260 = vadd.s32 %v254, %v258
        %v261 = vadd.s32 %v255, %v259
        %v262 = vmul.u32 %v260, 16
        %v263 = vmul.u32 %v261, 16
        %v265 = vlaneseq
        %v266 = vshrl.u32 %v265, 7
        %v267 = vsub.s32 0, %v266
        %v268 = vrot.slane %v166, %v267
        %v269 = vlaneseq
        %v270 = vshrl.u32 %v269, 7
        %v271 = vsub.s32 1, %v270
        %v272 = vrot.slane %v166, %v271
        %275 = vrot.lane.b32.xlu0 %v268, 17
        %v276 = vpop.permute.xlu0 %275
        %277 = vrot.lane.b32.xlu0 %v272, 17
        %v278 = vpop.permute.xlu0 %277
        %vm279 = vcmp.lt.s32.totalorder %v172, 17
        %v280 = vsel %vm279, %v276, %v278
        %v281 = vsel %vm279, %v278, %v276
        %vm282 = vcmp.ne.s32.totalorder %v172, %v262
        %vm283 = vcmp.ne.s32.totalorder %v173, %v263
        %vm284 = vmand %vm174, %vm282
        %vm285 = vmand %vm175, %vm283
        %v286 = vsel %vm284, %v281, 0.0
        %v287 = vsel %vm285, %v280, 0.0
        %v288 = vlaneseq
        %v289 = vshrl.u32 %v288, 7
        %v290 = vsub.s32 0, %v289
        %v291 = vrot.slane %v286, %v290
        %v292 = vlaneseq
        %v293 = vshrl.u32 %v292, 7
        %v294 = vsub.s32 0, %v293
        %v295 = vrot.slane %v287, %v294
        %297 = vset.pattern.permute.xlu0 0
        %298 = vperm.xlu0 %297, %v167
        %v299 = vpop.permute.xlu0 %298
        %302 = vset.pattern.permute.xlu0 0
        %303 = vperm.xlu0 %302, %v168
        %v304 = vpop.permute.xlu0 %303
        %307 = vset.pattern.permute.xlu0 0
        %308 = vperm.xlu0 %307, %v169
        %v309 = vpop.permute.xlu0 %308
        %312 = vset.pattern.permute.xlu0 0
        %313 = vperm.xlu0 %312, %v170
        %v314 = vpop.permute.xlu0 %313
        %v316 = vmul.f32 %v291, %v299
        %v317 = vmul.f32 %v295, %v299
        %v318 = vmul.f32 %v291, %v304
        %v319 = vmul.f32 %v295, %v304
        %v320 = vmul.f32 %v291, %v309
        %v321 = vmul.f32 %v295, %v309
        %v322 = vmul.f32 %v291, %v314
        %v323 = vmul.f32 %v295, %v314
        %v324 = vadd.f32 %v316, 0.0
        %v325 = vadd.f32 %v317, 0.0
        %v326 = vadd.f32 %v318, 0.0
        %v327 = vadd.f32 %v319, 0.0
        %v328 = vadd.f32 %v320, 0.0
        %v329 = vadd.f32 %v321, 0.0
        %v330 = vadd.f32 %v322, 0.0
        %v331 = vadd.f32 %v323, 0.0
        %332 = vrot.lane.b32.xlu0 %v268, 16
        %v333 = vpop.permute.xlu0 %332
        %334 = vrot.lane.b32.xlu0 %v272, 16
        %v335 = vpop.permute.xlu0 %334
        %vm336 = vcmp.lt.s32.totalorder %v172, 16
        %v337 = vsel %vm336, %v333, %v335
        %v338 = vsel %vm336, %v335, %v333
        %v339 = vsel %vm174, %v338, 0.0
        %v340 = vsel %vm175, %v337, 0.0
        %v341 = vlaneseq
        %v342 = vshrl.u32 %v341, 7
        %v343 = vsub.s32 0, %v342
        %v344 = vrot.slane %v339, %v343
        %v345 = vlaneseq
        %v346 = vshrl.u32 %v345, 7
        %v347 = vsub.s32 0, %v346
        %v348 = vrot.slane %v340, %v347
        %349 = vset.pattern.permute.xlu0 1
        %350 = vperm.xlu0 %349, %v167
        %v351 = vpop.permute.xlu0 %350
        %353 = vset.pattern.permute.xlu0 1
        %354 = vperm.xlu0 %353, %v168
        %v355 = vpop.permute.xlu0 %354
        %357 = vset.pattern.permute.xlu0 1
        %358 = vperm.xlu0 %357, %v169
        %v359 = vpop.permute.xlu0 %358
        %361 = vset.pattern.permute.xlu0 1
        %362 = vperm.xlu0 %361, %v170
        %v363 = vpop.permute.xlu0 %362
        %v365 = vmul.f32 %v344, %v351
        %v366 = vmul.f32 %v348, %v351
        %v367 = vmul.f32 %v344, %v355
        %v368 = vmul.f32 %v348, %v355
        %v369 = vmul.f32 %v344, %v359
        %v370 = vmul.f32 %v348, %v359
        %v371 = vmul.f32 %v344, %v363
        %v372 = vmul.f32 %v348, %v363
        %v373 = vadd.f32 %v324, %v365
        %v374 = vadd.f32 %v325, %v366
        %v375 = vadd.f32 %v326, %v367
        %v376 = vadd.f32 %v327, %v368
        %v377 = vadd.f32 %v328, %v369
        %v378 = vadd.f32 %v329, %v370
        %v379 = vadd.f32 %v330, %v371
        %v380 = vadd.f32 %v331, %v372
        %381 = vrot.lane.b32.xlu0 %v268, 15
        %v382 = vpop.permute.xlu0 %381
        %383 = vrot.lane.b32.xlu0 %v272, 15
        %v384 = vpop.permute.xlu0 %383
        %vm385 = vcmp.lt.s32.totalorder %v172, 15
        %v386 = vsel %vm385, %v382, %v384
        %v387 = vsel %vm385, %v384, %v382
        %v388 = vadd.s32 %v262, 15
        %v389 = vadd.s32 %v263, 15
        %vm390 = vcmp.ne.s32.totalorder %v172, %v388
        %vm391 = vcmp.ne.s32.totalorder %v173, %v389
        %vm392 = vmand %vm174, %vm390
        %vm393 = vmand %vm175, %vm391
        %v394 = vsel %vm392, %v387, 0.0
        %v395 = vsel %vm393, %v386, 0.0
        %v396 = vlaneseq
        %v397 = vshrl.u32 %v396, 7
        %v398 = vsub.s32 0, %v397
        %v399 = vrot.slane %v394, %v398
        %v400 = vlaneseq
        %v401 = vshrl.u32 %v400, 7
        %v402 = vsub.s32 0, %v401
        %v403 = vrot.slane %v395, %v402
        %404 = vset.pattern.permute.xlu0 2
        %405 = vperm.xlu0 %404, %v167
        %v406 = vpop.permute.xlu0 %405
        %408 = vset.pattern.permute.xlu0 2
        %409 = vperm.xlu0 %408, %v168
        %v410 = vpop.permute.xlu0 %409
        %412 = vset.pattern.permute.xlu0 2
        %413 = vperm.xlu0 %412, %v169
        %v414 = vpop.permute.xlu0 %413
        %416 = vset.pattern.permute.xlu0 2
        %417 = vperm.xlu0 %416, %v170
        %v418 = vpop.permute.xlu0 %417
        %v420 = vmul.f32 %v399, %v406
        %v421 = vmul.f32 %v403, %v406
        %v422 = vmul.f32 %v399, %v410
        %v423 = vmul.f32 %v403, %v410
        %v424 = vmul.f32 %v399, %v414
        %v425 = vmul.f32 %v403, %v414
        %v426 = vmul.f32 %v399, %v418
        %v427 = vmul.f32 %v403, %v418
        %v428 = vadd.f32 %v373, %v420
        %v429 = vadd.f32 %v374, %v421
        %v430 = vadd.f32 %v375, %v422
        %v431 = vadd.f32 %v376, %v423
        %v432 = vadd.f32 %v377, %v424
        %v433 = vadd.f32 %v378, %v425
        %v434 = vadd.f32 %v379, %v426
        %v435 = vadd.f32 %v380, %v427
        %436 = vrot.lane.b32.xlu0 %v268, 1
        %v437 = vpop.permute.xlu0 %436
        %438 = vrot.lane.b32.xlu0 %v272, 1
        %v439 = vpop.permute.xlu0 %438
        %vm440 = vcmp.lt.s32.totalorder %v172, 1
        %v441 = vsel %vm440, %v437, %v439
        %v442 = vsel %vm440, %v439, %v437
        %v443 = vsel %vm282, %v442, 0.0
        %v444 = vsel %vm283, %v441, 0.0
        %v445 = vlaneseq
        %v446 = vshrl.u32 %v445, 7
        %v447 = vsub.s32 0, %v446
        %v448 = vrot.slane %v443, %v447
        %v449 = vlaneseq
        %v450 = vshrl.u32 %v449, 7
        %v451 = vsub.s32 0, %v450
        %v452 = vrot.slane %v444, %v451
        %453 = vset.pattern.permute.xlu0 3
        %454 = vperm.xlu0 %453, %v167
        %v455 = vpop.permute.xlu0 %454
        %457 = vset.pattern.permute.xlu0 3
        %458 = vperm.xlu0 %457, %v168
        %v459 = vpop.permute.xlu0 %458
        %461 = vset.pattern.permute.xlu0 3
        %462 = vperm.xlu0 %461, %v169
        %v463 = vpop.permute.xlu0 %462
        %465 = vset.pattern.permute.xlu0 3
        %466 = vperm.xlu0 %465, %v170
        %v467 = vpop.permute.xlu0 %466
        %v469 = vmul.f32 %v448, %v455
        %v470 = vmul.f32 %v452, %v455
        %v471 = vmul.f32 %v448, %v459
        %v472 = vmul.f32 %v452, %v459
        %v473 = vmul.f32 %v448, %v463
        %v474 = vmul.f32 %v452, %v463
        %v475 = vmul.f32 %v448, %v467
        %v476 = vmul.f32 %v452, %v467
        %v477 = vadd.f32 %v428, %v469
        %v478 = vadd.f32 %v429, %v470
        %v479 = vadd.f32 %v430, %v471
        %v480 = vadd.f32 %v431, %v472
        %v481 = vadd.f32 %v432, %v473
        %v482 = vadd.f32 %v433, %v474
        %v483 = vadd.f32 %v434, %v475
        %v484 = vadd.f32 %v435, %v476
        %485 = vset.pattern.permute.xlu0 4
        %486 = vperm.xlu0 %485, %v167
        %v487 = vpop.permute.xlu0 %486
        %489 = vset.pattern.permute.xlu0 4
        %490 = vperm.xlu0 %489, %v168
        %v491 = vpop.permute.xlu0 %490
        %493 = vset.pattern.permute.xlu0 4
        %494 = vperm.xlu0 %493, %v169
        %v495 = vpop.permute.xlu0 %494
        %497 = vset.pattern.permute.xlu0 4
        %498 = vperm.xlu0 %497, %v170
        %v499 = vpop.permute.xlu0 %498
        %v501 = vmul.f32 %v268, %v487
        %v502 = vmul.f32 %v272, %v487
        %v503 = vmul.f32 %v268, %v491
        %v504 = vmul.f32 %v272, %v491
        %v505 = vmul.f32 %v268, %v495
        %v506 = vmul.f32 %v272, %v495
        %v507 = vmul.f32 %v268, %v499
        %v508 = vmul.f32 %v272, %v499
        %v509 = vadd.f32 %v477, %v501
        %v510 = vadd.f32 %v478, %v502
        %v511 = vadd.f32 %v479, %v503
        %v512 = vadd.f32 %v480, %v504
        %v513 = vadd.f32 %v481, %v505
        %v514 = vadd.f32 %v482, %v506
        %v515 = vadd.f32 %v483, %v507
        %v516 = vadd.f32 %v484, %v508
        %517 = vrot.lane.b32.xlu0 %v268, 127
        %v518 = vpop.permute.xlu0 %517
        %519 = vrot.lane.b32.xlu0 %v272, 127
        %v520 = vpop.permute.xlu0 %519
        %vm521 = vcmp.lt.s32.totalorder %v172, 127
        %v522 = vsel %vm521, %v518, %v520
        %v523 = vsel %vm521, %v520, %v518
        %v524 = vsel %vm390, %v522, 0.0
        %v525 = vsel %vm391, %v523, 0.0
        %v526 = vlaneseq
        %v527 = vshrl.u32 %v526, 7
        %v528 = vsub.s32 0, %v527
        %v529 = vrot.slane %v524, %v528
        %v530 = vlaneseq
        %v531 = vshrl.u32 %v530, 7
        %v532 = vsub.s32 0, %v531
        %v533 = vrot.slane %v525, %v532
        %534 = vset.pattern.permute.xlu0 5
        %535 = vperm.xlu0 %534, %v167
        %v536 = vpop.permute.xlu0 %535
        %538 = vset.pattern.permute.xlu0 5
        %539 = vperm.xlu0 %538, %v168
        %v540 = vpop.permute.xlu0 %539
        %542 = vset.pattern.permute.xlu0 5
        %543 = vperm.xlu0 %542, %v169
        %v544 = vpop.permute.xlu0 %543
        %546 = vset.pattern.permute.xlu0 5
        %547 = vperm.xlu0 %546, %v170
        %v548 = vpop.permute.xlu0 %547
        %v550 = vmul.f32 %v529, %v536
        %v551 = vmul.f32 %v533, %v536
        %v552 = vmul.f32 %v529, %v540
        %v553 = vmul.f32 %v533, %v540
        %v554 = vmul.f32 %v529, %v544
        %v555 = vmul.f32 %v533, %v544
        %v556 = vmul.f32 %v529, %v548
        %v557 = vmul.f32 %v533, %v548
        %v558 = vadd.f32 %v509, %v550
        %v559 = vadd.f32 %v510, %v551
        %v560 = vadd.f32 %v511, %v552
        %v561 = vadd.f32 %v512, %v553
        %v562 = vadd.f32 %v513, %v554
        %v563 = vadd.f32 %v514, %v555
        %v564 = vadd.f32 %v515, %v556
        %v565 = vadd.f32 %v516, %v557
        %566 = vrot.lane.b32.xlu0 %v268, 113
        %v567 = vpop.permute.xlu0 %566
        %568 = vrot.lane.b32.xlu0 %v272, 113
        %v569 = vpop.permute.xlu0 %568
        %vm570 = vcmp.lt.s32.totalorder %v172, 113
        %v571 = vsel %vm570, %v567, %v569
        %v572 = vsel %vm570, %v569, %v567
        %vm573 = vcmp.lt.s32.totalorder %v172, 240
        %vm574 = vcmp.lt.s32.totalorder %v173, 240
        %vm575 = vmand %vm573, %vm282
        %vm576 = vmand %vm574, %vm283
        %v577 = vsel %vm575, %v571, 0.0
        %v578 = vsel %vm576, %v572, 0.0
        %v579 = vlaneseq
        %v580 = vshrl.u32 %v579, 7
        %v581 = vsub.s32 0, %v580
        %v582 = vrot.slane %v577, %v581
        %v583 = vlaneseq
        %v584 = vshrl.u32 %v583, 7
        %v585 = vsub.s32 0, %v584
        %v586 = vrot.slane %v578, %v585
        %587 = vset.pattern.permute.xlu0 6
        %588 = vperm.xlu0 %587, %v167
        %v589 = vpop.permute.xlu0 %588
        %591 = vset.pattern.permute.xlu0 6
        %592 = vperm.xlu0 %591, %v168
        %v593 = vpop.permute.xlu0 %592
        %595 = vset.pattern.permute.xlu0 6
        %596 = vperm.xlu0 %595, %v169
        %v597 = vpop.permute.xlu0 %596
        %599 = vset.pattern.permute.xlu0 6
        %600 = vperm.xlu0 %599, %v170
        %v601 = vpop.permute.xlu0 %600
        %v603 = vmul.f32 %v582, %v589
        %v604 = vmul.f32 %v586, %v589
        %v605 = vmul.f32 %v582, %v593
        %v606 = vmul.f32 %v586, %v593
        %v607 = vmul.f32 %v582, %v597
        %v608 = vmul.f32 %v586, %v597
        %v609 = vmul.f32 %v582, %v601
        %v610 = vmul.f32 %v586, %v601
        %v611 = vadd.f32 %v558, %v603
        %v612 = vadd.f32 %v559, %v604
        %v613 = vadd.f32 %v560, %v605
        %v614 = vadd.f32 %v561, %v606
        %v615 = vadd.f32 %v562, %v607
        %v616 = vadd.f32 %v563, %v608
        %v617 = vadd.f32 %v564, %v609
        %v618 = vadd.f32 %v565, %v610
        %619 = vrot.lane.b32.xlu0 %v268, 112
        %v620 = vpop.permute.xlu0 %619
        %621 = vrot.lane.b32.xlu0 %v272, 112
        %v622 = vpop.permute.xlu0 %621
        %vm623 = vcmp.lt.s32.totalorder %v172, 112
        %v624 = vsel %vm623, %v620, %v622
        %v625 = vsel %vm623, %v622, %v620
        %v626 = vsel %vm573, %v624, 0.0
        %v627 = vsel %vm574, %v625, 0.0
        %v628 = vlaneseq
        %v629 = vshrl.u32 %v628, 7
        %v630 = vsub.s32 0, %v629
        %v631 = vrot.slane %v626, %v630
        %v632 = vlaneseq
        %v633 = vshrl.u32 %v632, 7
        %v634 = vsub.s32 0, %v633
        %v635 = vrot.slane %v627, %v634
        %636 = vset.pattern.permute.xlu0 7
        %637 = vperm.xlu0 %636, %v167
        %v638 = vpop.permute.xlu0 %637
        %640 = vset.pattern.permute.xlu0 7
        %641 = vperm.xlu0 %640, %v168
        %v642 = vpop.permute.xlu0 %641
        %644 = vset.pattern.permute.xlu0 7
        %645 = vperm.xlu0 %644, %v169
        %v646 = vpop.permute.xlu0 %645
        %648 = vset.pattern.permute.xlu0 7
        %649 = vperm.xlu0 %648, %v170
        %v650 = vpop.permute.xlu0 %649
        %v652 = vmul.f32 %v631, %v638
        %v653 = vmul.f32 %v635, %v638
        %v654 = vmul.f32 %v631, %v642
        %v655 = vmul.f32 %v635, %v642
        %v656 = vmul.f32 %v631, %v646
        %v657 = vmul.f32 %v635, %v646
        %v658 = vmul.f32 %v631, %v650
        %v659 = vmul.f32 %v635, %v650
        %v660 = vadd.f32 %v611, %v652
        %v661 = vadd.f32 %v612, %v653
        %v662 = vadd.f32 %v613, %v654
        %v663 = vadd.f32 %v614, %v655
        %v664 = vadd.f32 %v615, %v656
        %v665 = vadd.f32 %v616, %v657
        %v666 = vadd.f32 %v617, %v658
        %v667 = vadd.f32 %v618, %v659
        %668 = vrot.lane.b32.xlu0 %v268, 111
        %v669 = vpop.permute.xlu0 %668
        %670 = vrot.lane.b32.xlu0 %v272, 111
        %v671 = vpop.permute.xlu0 %670
        %vm672 = vcmp.lt.s32.totalorder %v172, 111
        %v673 = vsel %vm672, %v669, %v671
        %v674 = vsel %vm672, %v671, %v669
        %vm675 = vmand %vm573, %vm390
        %vm676 = vmand %vm574, %vm391
        %v677 = vsel %vm675, %v673, 0.0
        %v678 = vsel %vm676, %v674, 0.0
        %v679 = vlaneseq
        %v680 = vshrl.u32 %v679, 7
        %v681 = vsub.s32 0, %v680
        %v682 = vrot.slane %v677, %v681
        %v683 = vlaneseq
        %v684 = vshrl.u32 %v683, 7
        %v685 = vsub.s32 0, %v684
        %v686 = vrot.slane %v678, %v685
        %687 = vset.pattern.permute.xlu0 8
        %688 = vperm.xlu0 %687, %v167
        %v689 = vpop.permute.xlu0 %688
        %691 = vset.pattern.permute.xlu0 8
        %692 = vperm.xlu0 %691, %v168
        %v693 = vpop.permute.xlu0 %692
        %695 = vset.pattern.permute.xlu0 8
        %696 = vperm.xlu0 %695, %v169
        %v697 = vpop.permute.xlu0 %696
        %699 = vset.pattern.permute.xlu0 8
        %700 = vperm.xlu0 %699, %v170
        %v701 = vpop.permute.xlu0 %700
        %v703 = vmul.f32 %v682, %v689
        %v704 = vmul.f32 %v686, %v689
        %v705 = vmul.f32 %v682, %v693
        %v706 = vmul.f32 %v686, %v693
        %v707 = vmul.f32 %v682, %v697
        %v708 = vmul.f32 %v686, %v697
        %v709 = vmul.f32 %v682, %v701
        %v710 = vmul.f32 %v686, %v701
        %v711 = vadd.f32 %v660, %v703
        %v712 = vadd.f32 %v661, %v704
        %v713 = vadd.f32 %v662, %v705
        %v714 = vadd.f32 %v663, %v706
        %v715 = vadd.f32 %v664, %v707
        %v716 = vadd.f32 %v665, %v708
        %v717 = vadd.f32 %v666, %v709
        %v718 = vadd.f32 %v667, %v710
        %719 = vset.pattern.permute.xlu0 9
        %720 = vperm.xlu0 %719, %v167
        %v721 = vpop.permute.xlu0 %720
        %723 = vset.pattern.permute.xlu0 9
        %724 = vperm.xlu0 %723, %v168
        %v725 = vpop.permute.xlu0 %724
        %727 = vset.pattern.permute.xlu0 9
        %728 = vperm.xlu0 %727, %v169
        %v729 = vpop.permute.xlu0 %728
        %731 = vset.pattern.permute.xlu0 9
        %732 = vperm.xlu0 %731, %v170
        %v733 = vpop.permute.xlu0 %732
        %v735 = vadd.f32 %v711, %v721
        %v736 = vadd.f32 %v712, %v721
        %v737 = vadd.f32 %v713, %v725
        %v738 = vadd.f32 %v714, %v725
        %v739 = vadd.f32 %v715, %v729
        %v740 = vadd.f32 %v716, %v729
        %v741 = vadd.f32 %v717, %v733
        %v742 = vadd.f32 %v718, %v733
        %v743 = vxor.u32 %v735, 2147483648
        %v744 = vxor.u32 %v736, 2147483648
        %v745 = vxor.u32 %v737, 2147483648
        %v746 = vxor.u32 %v738, 2147483648
        %v747 = vxor.u32 %v739, 2147483648
        %v748 = vxor.u32 %v740, 2147483648
        %v749 = vxor.u32 %v741, 2147483648
        %v750 = vxor.u32 %v742, 2147483648
        %v751 = vmul.f32 %v743, 1.442695
        %v752 = vpow.pop %v751
        %v753 = vmul.f32 %v744, 1.442695
        %v754 = vpow.pop %v753
        %v755 = vmul.f32 %v745, 1.442695
        %v756 = vpow.pop %v755
        %v757 = vmul.f32 %v746, 1.442695
        %v758 = vpow.pop %v757
        %v759 = vmul.f32 %v747, 1.442695
        %v760 = vpow.pop %v759
        %v761 = vmul.f32 %v748, 1.442695
        %v762 = vpow.pop %v761
        %v763 = vmul.f32 %v749, 1.442695
        %v764 = vpow.pop %v763
        %v765 = vmul.f32 %v750, 1.442695
        %v766 = vpow.pop %v765
        %v767 = vadd.f32 %v752, 1.0
        %v768 = vadd.f32 %v754, 1.0
        %v769 = vadd.f32 %v756, 1.0
        %v770 = vadd.f32 %v758, 1.0
        %v771 = vadd.f32 %v760, 1.0
        %v772 = vadd.f32 %v762, 1.0
        %v773 = vadd.f32 %v764, 1.0
        %v774 = vadd.f32 %v766, 1.0
        %v775 = vrcp.pop %v767
        %v776 = vmul.f32 1.0, %v775
        %v777 = vrcp.pop %v768
        %v778 = vmul.f32 1.0, %v777
        %v779 = vrcp.pop %v769
        %v780 = vmul.f32 1.0, %v779
        %v781 = vrcp.pop %v770
        %v782 = vmul.f32 1.0, %v781
        %v783 = vrcp.pop %v771
        %v784 = vmul.f32 1.0, %v783
        %v785 = vrcp.pop %v772
        %v786 = vmul.f32 1.0, %v785
        %v787 = vrcp.pop %v773
        %v788 = vmul.f32 1.0, %v787
        %v789 = vrcp.pop %v774
        %v790 = vmul.f32 1.0, %v789
        %v791 = vmul.f32 %v735, %v776
        %v792 = vmul.f32 %v736, %v778
        %v793 = vmul.f32 %v737, %v780
        %v794 = vmul.f32 %v738, %v782
        %v795 = vmul.f32 %v739, %v784
        %v796 = vmul.f32 %v740, %v786
        %v797 = vmul.f32 %v741, %v788
        %v798 = vmul.f32 %v742, %v790
        %v799 = vadd.f32 %v791, %v792
        %800 = vadd.xlane.f32.xlu0 %v799
        %v801 = vpop.xlane.xlu0 %800
        %v802 = vadd.f32 %v793, %v794
        %803 = vadd.xlane.f32.xlu0 %v802
        %v804 = vpop.xlane.xlu0 %803
        %v805 = vadd.f32 %v795, %v796
        %806 = vadd.xlane.f32.xlu0 %v805
        %v807 = vpop.xlane.xlu0 %806
        %v808 = vadd.f32 %v797, %v798
        %809 = vadd.xlane.f32.xlu0 %v808
        %v810 = vpop.xlane.xlu0 %809
        %v811 = vmul.f32 %v801, %v167
        %v812 = vmul.f32 %v804, %v168
        %v813 = vmul.f32 %v807, %v169
        %v814 = vmul.f32 %v810, %v170
        %s815 = sld [smem:[#allocation2]]
        %820 = vrot.lane.b32.xlu0 %v811, 118
        %v821 = vpop.permute.xlu0 %820
        %822 = vrot.lane.b32.xlu0 %v812, 118
        %v823 = vpop.permute.xlu0 %822
        %824 = vrot.lane.b32.xlu0 %v813, 118
        %v825 = vpop.permute.xlu0 %824
        %826 = vrot.lane.b32.xlu0 %v814, 118
        %v827 = vpop.permute.xlu0 %826
        %vm832 = vcmask 7168
        %v833 = vsel %vm832, %v821, 0.0
        %v834 = vsel %vm832, %v823, 0.0
        %v835 = vadd.f32 %v833, %v834
        %v836 = vsel %vm832, %v825, 0.0
        %v837 = vadd.f32 %v835, %v836
        %v838 = vsel %vm832, %v827, 0.0
        %v839 = vadd.f32 %v837, %v838
        %840 = vadd.xlane.f32.xlu0 %v839
        %v841 = vpop.xlane.xlu0 %840
        %v842 = vrot.slane %v841, 4
        %v843 = vadd.f32 %v841, %v842
        %v844 = vrot.slane %v843, 2
        %v845 = vadd.f32 %v843, %v844
        %v846 = vrot.slane %v845, 1
        %v847 = vadd.f32 %v845, %v846
        %s848 = vtos %v847
        %s849 = smul.f32 %s848, 0.00390625
        %s850 = sadd.f32 %s849, %s815
        %vm851 = vcmp.eq.s32.totalorder %v172, 0
        %v852 = vstv %s850
        %v853 = vsel %vm851, %v852, 0.0
        %854 = vst [vmem:[%s161] sm:$0x1] %v853
        %s855 = sand.u32 %s94, 1
        %s856 = scalar_lea.sflag [#allocation4], %s855
        %s857 = sand.u32 %s94, 1
        %s858 = scalar_lea.vmem [#allocation3], %s857
        // Predicated region
        $region33: #{tpu_custom_call.1} parent=31 // pred_check
          %p859 = pneg %p104
        $region34: #{tpu_custom_call.1} parent=31 // pred_check_branch
          %861 = sbr.rel (%p859) target = $region36
        $region35: #{tpu_custom_call.1} parent=31 // pred_region
          %s863 = ssub.s32 16, 16
          %864 = vsyncadd %s856, %s863
          %s865 = smul.addr %s18, 16
          %s866 = scalar_lea.hbm %s3, %s865
          %s868 = sshll.u32 %s858, 4
          %s869 = int_to_ptr.vmem [resolvable:$true] %s868
          %871 = dma.vmem_to_hbm [thread:$0]  %s869, 16, %s866, %s856
        $region36: #{tpu_custom_call.1} parent=31 // pred_fallthru
          _
      $region32: #{tpu_custom_call.1} parent=5 // pred_fallthru
        _
      %p872 = scmp.le.s32.totalorder 2, %s13
      // Predicated region
      $region37: #{tpu_custom_call.1} parent=5 // pred_check
        %p873 = pneg %p872
      $region38: #{tpu_custom_call.1} parent=5 // pred_check_branch
        %875 = sbr.rel (%p873) target = $region40
      $region39: #{tpu_custom_call.1} parent=5 // pred_region
        %s876 = ssub.s32 %s13, 2
        // Predicated region
        $region41: #{tpu_custom_call.1} parent=39 // pred_check
          %p877 = pneg %p110
        $region42: #{tpu_custom_call.1} parent=39 // pred_check_branch
          %879 = sbr.rel (%p877) target = $region44
        $region43: #{tpu_custom_call.1} parent=39 // pred_region
          %s880 = sand.u32 %s95, 1
          %s881 = scalar_lea.sflag [#allocation4], %s880
          %s882 = sand.u32 %s95, 1
          %s883 = scalar_lea.vmem [#allocation3], %s882
          %884 = dma.done %s881, 16
        $region44: #{tpu_custom_call.1} parent=39 // pred_fallthru
          _
      $region40: #{tpu_custom_call.1} parent=5 // pred_fallthru
        _
    $region6: #{tpu_custom_call.1} parent=1 // loop_footer
      %s17 = sadd.s32 1, %s13
    $region7: #{tpu_custom_call.1} parent=1 // loop_footer_branch
      %12 = sbr.rel target = $region3
    $region8: #{tpu_custom_call.1} parent=1 // loop_exit
      _
    %885 = vsyncpa [#allocation4], 1
    %s886 = scalar_lea.sflag [#allocation4], 1
    %887 = vsyncpa %s886, 1

</llo_original>
